<compile_context>
chip_gen: v7x
topology: tpu7x:2x2x1
jax: 0.10.0
libtpu: 0.0.40
codegen_flags: <defaults>
</compile_context>

<pallas_src>
import jax
import jax.numpy as jnp
from jax.experimental import pallas as pl
from jax.experimental.pallas import tpu as pltpu

# ---- hyperparameters (mirror the PyTorch module __init__ args) ----
BATCH          = 2      # example batch at the call site
INPUT_SIZE     = 4      # in_channels
HIDDEN_SIZE    = 32
ACTION_SPACE   = 1      # prev_action is (B, 1) in the module
FEATURE_SEQ    = 16
RELU_SLOPE     = 0.01
KERNEL_SIZE    = 3
STRIDE         = 1
DROPOUT        = 0.1    # identity in eval mode
MAXPOOL_KERNEL = 2
MAXPOOL_STRIDE = 2
BN_EPS         = 1e-5


def conv_out_len(l, k, s):
    return (l - k) // s + 1


L1 = conv_out_len(FEATURE_SEQ, KERNEL_SIZE, STRIDE)     # 14
L2 = conv_out_len(L1, KERNEL_SIZE, STRIDE)              # 12
L3 = conv_out_len(L2, MAXPOOL_KERNEL, MAXPOOL_STRIDE)   # 6
TO_LINEAR = HIDDEN_SIZE * L3                            # module's self._to_linear (192)

# Lane layout: batch element r of a block occupies lanes [r*SEG, r*SEG + SEG);
# position index = original window-start index (stride-1 convs, pool stride 2).
SEG   = FEATURE_SEQ                                     # 16 lanes per batch element
BB    = 8                                               # batch elements per kernel block
LANES = BB * SEG                                        # 128 -> full vreg lane width
WP = (BB - 1) * SEG + (L3 - 1) * MAXPOOL_STRIDE + 1     # 123: pooled lane width needed
WZ = WP + (MAXPOOL_KERNEL - 1)                          # 124: conv2-out lane width needed
assert LANES == 128
assert WZ + KERNEL_SIZE - 1 <= LANES                    # conv2 taps stay inside conv1 out

# ---- packed constant slab layout (rows of a (SLAB_ROWS, 128) f32 array) ----
R_W1, R_W2, R_WMAP, R_SEL = 0, 32, 64, 96
R_WA   = R_SEL + LANES            # 224: prev_action linear weight (broadcast row)
R_BIAS = R_WA + 1                 # 225: linear bias (broadcast row)
SLAB_ROWS = R_SEL + LANES + 8     # 232 (multiple of 8)
COL_SH1 = INPUT_SIZE * KERNEL_SIZE   # 12: conv1 bias+BN shift column
COL_SH2 = COL_SH1 + 1                # 13: conv2 bias+BN shift column

# ---- per-call dynamic block layout (DYN_ROWS x 128 per batch block) ----
IM1_ROWS = INPUT_SIZE * KERNEL_SIZE   # 12 conv1 im2col rows (row = k*Cin + c)
DYN_ROWS = 16                         # rows 0:12 im2col, row 12 prev_action, 13:15 pad


def policy_cnn_kernel(slab_ref, dyn_ref, out_ref):
    # ---- carve the packed constant slab (static slices, no extra DMA) ----
    w1m  = slab_ref[R_W1:R_W1 + HIDDEN_SIZE, 0:IM1_ROWS]                     # (32, 12)
    shs  = slab_ref[R_W1:R_W1 + HIDDEN_SIZE, COL_SH1:COL_SH2 + 1]            # (32, 2)
    w2m  = slab_ref[R_W2:R_W2 + HIDDEN_SIZE, 0:HIDDEN_SIZE * KERNEL_SIZE]    # (32, 96)
    wmap = slab_ref[R_WMAP:R_WMAP + HIDDEN_SIZE, 0:WP]                       # (32, 123)
    sel  = slab_ref[R_SEL:R_SEL + WP, :]                                     # (123, 128)
    w_pa = slab_ref[R_WA:R_WA + 1, :]                                        # (1, 128)
    bias = slab_ref[R_BIAS:R_BIAS + 1, :]                                    # (1, 128)

    im1 = dyn_ref[0:IM1_ROWS, :]                                             # (12, 128)
    pa  = dyn_ref[IM1_ROWS:IM1_ROWS + 1, :]                                  # (1, 128)

    # ---- Conv1d #1 (+ folded eval-BatchNorm) as one im2col matmul over 8 batches ----
    y = jnp.dot(w1m, im1, preferred_element_type=jnp.float32)                # (32, 128)
    y = y + shs[:, 0:1]
    y = jnp.where(y >= 0.0, y, RELU_SLOPE * y)                               # LeakyReLU
    # Dropout: identity in eval mode.

    # ---- Conv1d #2 (+ folded eval-BatchNorm): in-kernel im2col, one matmul ----
    # Taps stacked on sublanes (32-row, tile-aligned blocks), row = k*H + c.
    y_p = jnp.concatenate([y[:, k:k + WZ] for k in range(KERNEL_SIZE)], axis=0)  # (96, 124)
    z = jnp.dot(w2m, y_p, preferred_element_type=jnp.float32)                # (32, 124)
    z = z + shs[:, 1:2]
    z = jnp.where(z >= 0.0, z, RELU_SLOPE * z)

    # ---- MaxPool1d(2,2) + flatten + Linear (conv-feature part), fused ----
    pooled = jnp.maximum(z[:, 0:WP], z[:, 1:WP + 1])       # (32, 123): max at every lane
    weighted = pooled * wmap                                # linear weights at pool-start lanes
    wsum = jnp.dot(weighted, sel,
                   preferred_element_type=jnp.float32)      # (32, 128): lanes 0:BB live
    dec = jnp.sum(wsum, axis=0, keepdims=True)              # (1, 128): channel reduction

    # ---- + prev_action * w_a + bias, tanh; lane-dense unmasked (8, 128) store ----
    dec = dec + pa * w_pa + bias
    out_ref[...] = jnp.broadcast_to(jnp.tanh(dec), (8, LANES))


@jax.jit
def policy_network_cnn(x, prev_action, slab):
    """Forward pass equivalent to PolicyNetworkCNN.forward (eval mode)."""
    b_real = x.shape[0]
    nblk = pl.cdiv(b_real, BB)
    b_pad = nblk * BB
    pad = b_pad - b_real

    # Layout plumbing only: NCL -> per-block (Cin, 128) with batch on the lane axis,
    # then the conv1 im2col (taps on sublanes, row = k*Cin + c), plus a prev_action row.
    x_p = jnp.pad(x, ((0, pad), (0, 0), (0, 0)))
    pa_p = jnp.pad(prev_action, ((0, pad), (0, 0)))
    x_cat = x_p.reshape(nblk, BB, INPUT_SIZE, SEG).transpose(0, 2, 1, 3)
    x_cat = x_cat.reshape(nblk, INPUT_SIZE, LANES)
    taps = [jnp.pad(x_cat[:, :, k:], ((0, 0), (0, 0), (0, k))) for k in range(KERNEL_SIZE)]
    im1 = jnp.stack(taps, axis=1).reshape(nblk, IM1_ROWS, LANES)
    pa_row = jnp.zeros((nblk, 1, LANES), jnp.float32).at[:, 0, :BB].set(
        pa_p.reshape(nblk, BB))
    zpad = jnp.zeros((nblk, DYN_ROWS - IM1_ROWS - 1, LANES), jnp.float32)
    dyn = jnp.concatenate([im1, pa_row, zpad], axis=1).reshape(nblk * DYN_ROWS, LANES)

    out = pl.pallas_call(
        policy_cnn_kernel,
        out_shape=jax.ShapeDtypeStruct((nblk * 8, LANES), jnp.float32),
        grid=(nblk,),
        in_specs=[
            pl.BlockSpec((SLAB_ROWS, LANES), lambda i: (0, 0)),   # constant slab
            pl.BlockSpec((DYN_ROWS, LANES), lambda i: (i, 0)),    # per-block dynamic data
        ],
        out_specs=pl.BlockSpec((8, LANES), lambda i: (i, 0)),
        compiler_params=pltpu.CompilerParams(dimension_semantics=("parallel",)),
    )(slab, dyn)

    # Per-block results sit lane-dense at lanes 0..BB-1 of the (broadcast) output tile.
    res = out.reshape(nblk, 8, LANES)[:, 0, :BB].reshape(b_pad, 1)
    return res[:b_real]


# ------------------------- parameter init (deterministic) -------------------------
def init_params(key):
    keys = jax.random.split(key, 10)

    def uniform(k, shape, fan_in):
        bound = 1.0 / (fan_in ** 0.5)
        return jax.random.uniform(k, shape, jnp.float32, -bound, bound)

    fan1 = INPUT_SIZE * KERNEL_SIZE
    w1 = uniform(keys[0], (HIDDEN_SIZE, INPUT_SIZE, KERNEL_SIZE), fan1)
    b1 = uniform(keys[1], (HIDDEN_SIZE, 1), fan1)
    gamma1 = jax.random.uniform(keys[2], (HIDDEN_SIZE, 1), jnp.float32, 0.5, 1.5)
    beta1  = jax.random.uniform(keys[3], (HIDDEN_SIZE, 1), jnp.float32, -0.5, 0.5)
    rm1 = jnp.zeros((HIDDEN_SIZE, 1), jnp.float32)   # running_mean (fresh module)
    rv1 = jnp.ones((HIDDEN_SIZE, 1), jnp.float32)    # running_var
    s1 = gamma1 / jnp.sqrt(rv1 + BN_EPS)             # general eval-BN fold
    t1 = beta1 - rm1 * s1

    fan2 = HIDDEN_SIZE * KERNEL_SIZE
    w2 = uniform(keys[4], (HIDDEN_SIZE, HIDDEN_SIZE, KERNEL_SIZE), fan2)
    b2 = uniform(keys[5], (HIDDEN_SIZE, 1), fan2)
    gamma2 = jax.random.uniform(keys[6], (HIDDEN_SIZE, 1), jnp.float32, 0.5, 1.5)
    beta2  = jax.random.uniform(keys[7], (HIDDEN_SIZE, 1), jnp.float32, -0.5, 0.5)
    rm2 = jnp.zeros((HIDDEN_SIZE, 1), jnp.float32)
    rv2 = jnp.ones((HIDDEN_SIZE, 1), jnp.float32)
    s2 = gamma2 / jnp.sqrt(rv2 + BN_EPS)
    t2 = beta2 - rm2 * s2

    fanl = TO_LINEAR + ACTION_SPACE
    wl = uniform(keys[8], (1, fanl), fanl)    # nn.Linear(to_linear + num_actions, 1)
    bl = uniform(keys[9], (1, 1), fanl)

    # ---------- kernel-side folded / packed constant slab (host, init-time) ----------
    # Fold BN scale into conv weights; fold conv-bias + BN shift into one column each.
    w1m = jnp.transpose(w1 * s1[:, :, None], (0, 2, 1)).reshape(HIDDEN_SIZE,
                                                                KERNEL_SIZE * INPUT_SIZE)
    w2m = jnp.transpose(w2 * s2[:, :, None], (0, 2, 1)).reshape(HIDDEN_SIZE,
                                                                KERNEL_SIZE * HIDDEN_SIZE)
    sh1 = b1 * s1 + t1
    sh2 = b2 * s2 + t2

    # Lane-dense pool+linear weight map and batch-segment selector (lanes 0..BB-1).
    wlx = wl[0, :TO_LINEAR].reshape(HIDDEN_SIZE, L3)      # flat feature index c*L3 + j
    wmap = jnp.zeros((HIDDEN_SIZE, LANES), jnp.float32)
    sel = jnp.zeros((LANES, LANES), jnp.float32)
    for b in range(BB):
        sel = sel.at[b * SEG:(b + 1) * SEG, b].set(1.0)
        for j in range(L3):
            wmap = wmap.at[:, b * SEG + j * MAXPOOL_STRIDE].set(wlx[:, j])

    slab = jnp.zeros((SLAB_ROWS, LANES), jnp.float32)
    slab = slab.at[R_W1:R_W1 + HIDDEN_SIZE, 0:KERNEL_SIZE * INPUT_SIZE].set(w1m)
    slab = slab.at[R_W1:R_W1 + HIDDEN_SIZE, COL_SH1].set(sh1[:, 0])
    slab = slab.at[R_W1:R_W1 + HIDDEN_SIZE, COL_SH2].set(sh2[:, 0])
    slab = slab.at[R_W2:R_W2 + HIDDEN_SIZE, 0:KERNEL_SIZE * HIDDEN_SIZE].set(w2m)
    slab = slab.at[R_WMAP:R_WMAP + HIDDEN_SIZE, :].set(wmap)
    slab = slab.at[R_SEL:R_SEL + LANES, :].set(sel)
    slab = slab.at[R_WA, :].set(wl[0, TO_LINEAR])        # prev_action weight (broadcast)
    slab = slab.at[R_BIAS, :].set(bl[0, 0])              # linear bias (broadcast)

    return dict(w1=w1, b1=b1, s1=s1, t1=t1, w2=w2, b2=b2, s2=s2, t2=t2,
                wl=wl, bl=bl, slab=slab)


# ------------------------- pure-JAX reference (for verification) -------------------------
def reference_forward(x, prev_action, p):
    dn1 = jax.lax.conv_dimension_numbers(x.shape, p['w1'].shape, ('NCH', 'OIH', 'NCH'))
    y = jax.lax.conv_general_dilated(x, p['w1'], (STRIDE,), 'VALID', dimension_numbers=dn1)
    y = y + p['b1'][None, :, :]
    y = y * p['s1'][None] + p['t1'][None]
    y = jnp.where(y >= 0, y, RELU_SLOPE * y)

    dn2 = jax.lax.conv_dimension_numbers(y.shape, p['w2'].shape, ('NCH', 'OIH', 'NCH'))
    z = jax.lax.conv_general_dilated(y, p['w2'], (STRIDE,), 'VALID', dimension_numbers=dn2)
    z = z + p['b2'][None, :, :]
    z = z * p['s2'][None] + p['t2'][None]
    z = jnp.where(z >= 0, z, RELU_SLOPE * z)

    pooled = jax.lax.reduce_window(z, -jnp.inf, jax.lax.max,
                                   (1, 1, MAXPOOL_KERNEL), (1, 1, MAXPOOL_STRIDE), 'VALID')
    flat = pooled.reshape(pooled.shape[0], -1)
    cat = jnp.concatenate([flat, prev_action], axis=1)
    dec = cat @ p['wl'].T + p['bl']
    return jnp.tanh(dec)


if __name__ == "__main__":
    key = jax.random.PRNGKey(0)
    pkey, xkey, akey = jax.random.split(key, 3)
    params = init_params(pkey)

    x = jax.random.normal(xkey, (BATCH, INPUT_SIZE, FEATURE_SEQ), jnp.float32)
    prev_action = jax.random.normal(akey, (BATCH, ACTION_SPACE), jnp.float32)

    out = policy_network_cnn(x, prev_action, params['slab'])
    out = jax.block_until_ready(out)

    ref = reference_forward(x, prev_action, params)
    assert out.shape == (BATCH, 1), out.shape
    assert bool(jnp.allclose(out, ref, atol=1e-4, rtol=1e-4)), (out, ref)

    print("KERNEL_OK")
</pallas_src>

<mosaic_0001>
module attributes {stable_mosaic.version = 11 : i64} {
  func.func @policy_cnn_kernel(%arg0: i32, %arg1: memref<232x128xf32, #tpu.memory_space<vmem>>, %arg2: memref<16x128xf32, #tpu.memory_space<vmem>>, %arg3: memref<8x128xf32, #tpu.memory_space<vmem>>) attributes {dimension_semantics = [#tpu.dimension_semantics<parallel>], iteration_bounds = array<i64: 1>, scalar_prefetch = 0 : i64, scratch_operands = 0 : i64, tpu.core_type = #tpu.core_type<tc>, window_params = [{pipeline_mode = #tpu.pipeline_mode<synchronous>, transform_indices = @transform_0, window_bounds = array<i64: 232, 128>}, {transform_indices = @transform_1, window_bounds = array<i64: 16, 128>}, {transform_indices = @transform_2, window_bounds = array<i64: 8, 128>}]} {
    %c0 = arith.constant 0 : index
    %c0_0 = arith.constant 0 : index
    %0 = vector.load %arg1[%c0, %c0_0] : memref<232x128xf32, #tpu.memory_space<vmem>>, vector<32x12xf32>
    %c0_1 = arith.constant 0 : index
    %c12 = arith.constant 12 : index
    %1 = vector.load %arg1[%c0_1, %c12] : memref<232x128xf32, #tpu.memory_space<vmem>>, vector<32x2xf32>
    %c32 = arith.constant 32 : index
    %c0_2 = arith.constant 0 : index
    %2 = vector.load %arg1[%c32, %c0_2] : memref<232x128xf32, #tpu.memory_space<vmem>>, vector<32x96xf32>
    %c64 = arith.constant 64 : index
    %c0_3 = arith.constant 0 : index
    %3 = vector.load %arg1[%c64, %c0_3] : memref<232x128xf32, #tpu.memory_space<vmem>>, vector<32x123xf32>
    %c96 = arith.constant 96 : index
    %c0_4 = arith.constant 0 : index
    %4 = vector.load %arg1[%c96, %c0_4] : memref<232x128xf32, #tpu.memory_space<vmem>>, vector<123x128xf32>
    %c224 = arith.constant 224 : index
    %c0_5 = arith.constant 0 : index
    %5 = vector.load %arg1[%c224, %c0_5] : memref<232x128xf32, #tpu.memory_space<vmem>>, vector<1x128xf32>
    %c225 = arith.constant 225 : index
    %c0_6 = arith.constant 0 : index
    %6 = vector.load %arg1[%c225, %c0_6] : memref<232x128xf32, #tpu.memory_space<vmem>>, vector<1x128xf32>
    %c0_7 = arith.constant 0 : index
    %c0_8 = arith.constant 0 : index
    %7 = vector.load %arg2[%c0_7, %c0_8] : memref<16x128xf32, #tpu.memory_space<vmem>>, vector<12x128xf32>
    %c12_9 = arith.constant 12 : index
    %c0_10 = arith.constant 0 : index
    %8 = vector.load %arg2[%c12_9, %c0_10] : memref<16x128xf32, #tpu.memory_space<vmem>>, vector<1x128xf32>
    %cst = arith.constant dense<0.000000e+00> : vector<32x128xf32>
    %9 = tpu.matmul %0, %7, %cst {dimension_numbers = #tpu.dot_dimension_numbers<[1], [0], [0], [1], [0, 0, 1, 1], [], []>} : vector<32x12xf32>, vector<12x128xf32>, vector<32x128xf32> -> vector<32x128xf32>
    %10 = vector.extract_strided_slice %1 {offsets = [0, 0], sizes = [32, 1], strides = [1, 1]} : vector<32x2xf32> to vector<32x1xf32>
    %11 = vector.broadcast %10 : vector<32x1xf32> to vector<32x128xf32>
    %12 = arith.addf %9, %11 : vector<32x128xf32>
    %cst_11 = arith.constant 0.000000e+00 : f32
    %13 = vector.broadcast %cst_11 : f32 to vector<32x128xf32>
    %14 = arith.cmpf oge, %12, %13 : vector<32x128xf32>
    %cst_12 = arith.constant 0.00999999977 : f32
    %15 = vector.broadcast %cst_12 : f32 to vector<32x128xf32>
    %16 = arith.mulf %15, %12 : vector<32x128xf32>
    %17 = arith.select %14, %12, %16 : vector<32x128xi1>, vector<32x128xf32>
    %18 = vector.extract_strided_slice %17 {offsets = [0, 0], sizes = [32, 124], strides = [1, 1]} : vector<32x128xf32> to vector<32x124xf32>
    %19 = vector.extract_strided_slice %17 {offsets = [0, 1], sizes = [32, 124], strides = [1, 1]} : vector<32x128xf32> to vector<32x124xf32>
    %20 = vector.extract_strided_slice %17 {offsets = [0, 2], sizes = [32, 124], strides = [1, 1]} : vector<32x128xf32> to vector<32x124xf32>
    %21 = tpu.concatenate %18, %19, %20 in 0 : vector<32x124xf32>, vector<32x124xf32>, vector<32x124xf32> -> vector<96x124xf32>
    %cst_13 = arith.constant dense<0.000000e+00> : vector<32x124xf32>
    %22 = tpu.matmul %2, %21, %cst_13 {dimension_numbers = #tpu.dot_dimension_numbers<[1], [0], [0], [1], [0, 0, 1, 1], [], []>} : vector<32x96xf32>, vector<96x124xf32>, vector<32x124xf32> -> vector<32x124xf32>
    %23 = vector.extract_strided_slice %1 {offsets = [0, 1], sizes = [32, 1], strides = [1, 1]} : vector<32x2xf32> to vector<32x1xf32>
    %24 = vector.broadcast %23 : vector<32x1xf32> to vector<32x124xf32>
    %25 = arith.addf %22, %24 : vector<32x124xf32>
    %cst_14 = arith.constant 0.000000e+00 : f32
    %26 = vector.broadcast %cst_14 : f32 to vector<32x124xf32>
    %27 = arith.cmpf oge, %25, %26 : vector<32x124xf32>
    %cst_15 = arith.constant 0.00999999977 : f32
    %28 = vector.broadcast %cst_15 : f32 to vector<32x124xf32>
    %29 = arith.mulf %28, %25 : vector<32x124xf32>
    %30 = arith.select %27, %25, %29 : vector<32x124xi1>, vector<32x124xf32>
    %31 = vector.extract_strided_slice %30 {offsets = [0, 0], sizes = [32, 123], strides = [1, 1]} : vector<32x124xf32> to vector<32x123xf32>
    %32 = vector.extract_strided_slice %30 {offsets = [0, 1], sizes = [32, 123], strides = [1, 1]} : vector<32x124xf32> to vector<32x123xf32>
    %33 = arith.maximumf %31, %32 : vector<32x123xf32>
    %34 = arith.mulf %33, %3 : vector<32x123xf32>
    %cst_16 = arith.constant dense<0.000000e+00> : vector<32x128xf32>
    %35 = tpu.matmul %34, %4, %cst_16 {dimension_numbers = #tpu.dot_dimension_numbers<[1], [0], [0], [1], [0, 0, 1, 1], [], []>} : vector<32x123xf32>, vector<123x128xf32>, vector<32x128xf32> -> vector<32x128xf32>
    %cst_17 = arith.constant dense<0.000000e+00> : vector<128xf32>
    %36 = vector.multi_reduction <add>, %35, %cst_17 [0] : vector<32x128xf32> to vector<128xf32>
    %37 = vector.shape_cast %36 : vector<128xf32> to vector<1x128xf32>
    %38 = arith.mulf %8, %5 : vector<1x128xf32>
    %39 = arith.addf %37, %38 : vector<1x128xf32>
    %40 = arith.addf %39, %6 : vector<1x128xf32>
    %41 = math.tanh %40 : vector<1x128xf32>
    %42 = vector.shape_cast %41 : vector<1x128xf32> to vector<1x128xf32>
    %43 = vector.broadcast %42 : vector<1x128xf32> to vector<8x128xf32>
    %c0_18 = arith.constant 0 : index
    %c0_19 = arith.constant 0 : index
    %44 = vector.load %arg3[%c0_18, %c0_19] : memref<8x128xf32, #tpu.memory_space<vmem>>, vector<8x128xf32>
    tpu.vector_store %arg3[%c0_18, %c0_19], %43 {strides = array<i32>} : memref<8x128xf32, #tpu.memory_space<vmem>>, vector<8x128xf32>,
    return
  }
  func.func @transform_0(%arg0: i32) -> (i32, i32) {
    %c0_i32 = arith.constant 0 : i32
    %c0_i32_0 = arith.constant 0 : i32
    %c0_i32_1 = arith.constant 0 : i32
    return %c0_i32, %c0_i32_0 : i32, i32
  }
  func.func @transform_1(%arg0: i32) -> (i32, i32) {
    %c0_i32 = arith.constant 0 : i32
    %c0_i32_0 = arith.constant 0 : i32
    return %arg0, %c0_i32 : i32, i32
  }
  func.func @transform_2(%arg0: i32) -> (i32, i32) {
    %c0_i32 = arith.constant 0 : i32
    %c0_i32_0 = arith.constant 0 : i32
    return %arg0, %c0_i32 : i32, i32
  }
}

</mosaic_0001>

<llo_original>
// kernel: policy_network_cnn.1
$region0: #{policy_network_cnn.1}
  #allocation0 [shape = 'u32[]', space=smem, size = 0x4, offset = 0x4, fixed_abs, tag = 'smem constant byte address 0x4 - core index']
  #allocation1 [shape = 'u32[144,128]{1,0:T(1,128)}', space=vmem, size = 0x12000, scoped, tag = 'internal scratch']
  %s0 = inlined_call_operand.vmem [shape: f32[232,128], index: 0, kind: input, shape index: {}]
  %s1 = inlined_call_operand.vmem [shape: f32[16,128], index: 1, kind: input, shape index: {}]
  %s2 = inlined_call_operand.vmem [shape: f32[8,128], index: 2, kind: output, shape index: {}]
  %s3 = sld [smem:[#allocation0]]
  $region18: #{policy_network_cnn.1} parent=0
    _
  %s5 = ssub.s32 1, %s3
  %s6 = scalar_select 0, %s5, %s3
  // Predicated region
  $region2: #{policy_network_cnn.1} parent=0 // pred_check
    _
  $region3: #{policy_network_cnn.1} parent=0 // pred_check_branch
    %8 = sbr.rel (0) target = $region5
  $region4: #{policy_network_cnn.1} parent=0 // pred_region
    _
  $region5: #{policy_network_cnn.1} parent=0 // pred_fallthru
    _
  // Predicated region
  $region6: #{policy_network_cnn.1} parent=0 // pred_check
    _
  $region7: #{policy_network_cnn.1} parent=0 // pred_check_branch
    %10 = sbr.rel (0) target = $region9
  $region8: #{policy_network_cnn.1} parent=0 // pred_region
    _
  $region9: #{policy_network_cnn.1} parent=0 // pred_fallthru
    _
  %v11 = vld [vmem:[%s0] sm:$0xff]
  %v12 = vld [vmem:[%s0 + $0x8] sm:$0xff]
  %v13 = vld [vmem:[%s0 + $0x10] sm:$0xff]
  %v14 = vld [vmem:[%s0 + $0x18] sm:$0xff]
  %v15 = vld [vmem:[%s0 + $0x20] sm:$0xff]
  %v16 = vld [vmem:[%s0 + $0x28] sm:$0xff]
  %v17 = vld [vmem:[%s0 + $0x30] sm:$0xff]
  %v18 = vld [vmem:[%s0 + $0x38] sm:$0xff]
  %v19 = vld [vmem:[%s0 + $0x40] sm:$0xff]
  %v20 = vld [vmem:[%s0 + $0x48] sm:$0xff]
  %v21 = vld [vmem:[%s0 + $0x50] sm:$0xff]
  %v22 = vld [vmem:[%s0 + $0x58] sm:$0xff]
  %v23 = vld [vmem:[%s0 + $0x60] sm:$0xff]
  %v24 = vld [vmem:[%s0 + $0x68] sm:$0xff]
  %v25 = vld [vmem:[%s0 + $0x70] sm:$0xff]
  %v26 = vld [vmem:[%s0 + $0x78] sm:$0xff]
  %v27 = vld [vmem:[%s0 + $0x80] sm:$0xff]
  %v28 = vld [vmem:[%s0 + $0x88] sm:$0xff]
  %v29 = vld [vmem:[%s0 + $0x90] sm:$0xff]
  %v30 = vld [vmem:[%s0 + $0x98] sm:$0xff]
  %v31 = vld [vmem:[%s0 + $0xa0] sm:$0xff]
  %v32 = vld [vmem:[%s0 + $0xa8] sm:$0xff]
  %v33 = vld [vmem:[%s0 + $0xb0] sm:$0xff]
  %v34 = vld [vmem:[%s0 + $0xb8] sm:$0xff]
  %v35 = vld [vmem:[%s0 + $0xc0] sm:$0xff]
  %v36 = vld [vmem:[%s0 + $0xc8] sm:$0xff]
  %v37 = vld [vmem:[%s0 + $0xd0] sm:$0xff]
  %v38 = vld [vmem:[%s0 + $0xd8] sm:$0x7]
  %v39 = vld [vmem:[%s0 + $0xe0] sm:$0x1]
  %v40 = vld [vmem:[%s0 + $0xe1] sm:$0x1]
  %v41 = vld [vmem:[%s1] sm:$0xff]
  %v42 = vld [vmem:[%s1 + $0x8] sm:$0xf]
  %v43 = vld [vmem:[%s1 + $0xc] sm:$0x1]
  %45 = vset.pattern.permute.xlu0 12
  %46 = vperm.xlu0 %45, %v11
  %v47 = vpop.permute.xlu0 %46
  %50 = vset.pattern.permute.xlu0 12
  %51 = vperm.xlu0 %50, %v12
  %v52 = vpop.permute.xlu0 %51
  %55 = vset.pattern.permute.xlu0 12
  %56 = vperm.xlu0 %55, %v13
  %v57 = vpop.permute.xlu0 %56
  %60 = vset.pattern.permute.xlu0 12
  %61 = vperm.xlu0 %60, %v14
  %v62 = vpop.permute.xlu0 %61
  %vm64 = vcmask 97280
  %v65 = vsel %vm64, %v11, 0
  %v67 = vsel %vm64, %v12, 0
  %v69 = vsel %vm64, %v13, 0
  %v71 = vsel %vm64, %v14, 0
  %vm73 = vcmask 1043456
  %v75 = vsel %vm73, %v42, 0
  %77 = vmatprep.subr.mxu0 0.0
  %78 = vmatpush1.msra.mxu0 %v41
  %79 = vmatprep.subr.mxu0 0.0
  %80 = vmatpush1.msra.mxu0 %v75
  %81 = vmatprep.subr.mxu0 0.0
  %82 = vmatpush1.msra.mxu0 0.0
  %83 = vmatprep.subr.mxu0 0.0
  %84 = vmatpush1.msra.mxu0 0.0
  %85 = vmatprep.subr.mxu0 0.0
  %86 = vmatpush1.msra.mxu0 0.0
  %87 = vmatprep.subr.mxu0 0.0
  %88 = vmatpush1.msra.mxu0 0.0
  %89 = vmatprep.subr.mxu0 0.0
  %90 = vmatpush1.msra.mxu0 0.0
  %91 = vmatprep.subr.mxu0 0.0
  %92 = vmatpush1.msra.mxu0 0.0
  %93 = vmatprep.subr.mxu0 0.0
  %94 = vmatpush1.msra.mxu0 0.0
  %95 = vmatprep.subr.mxu0 0.0
  %96 = vmatpush1.msra.mxu0 0.0
  %97 = vmatprep.subr.mxu0 0.0
  %98 = vmatpush1.msra.mxu0 0.0
  %99 = vmatprep.subr.mxu0 0.0
  %100 = vmatpush1.msra.mxu0 0.0
  %101 = vmatprep.subr.mxu0 0.0
  %102 = vmatpush1.msra.mxu0 0.0
  %103 = vmatprep.subr.mxu0 0.0
  %104 = vmatpush1.msra.mxu0 0.0
  %105 = vmatprep.subr.mxu0 0.0
  %106 = vmatpush1.msra.mxu0 0.0
  %107 = vmatprep.subr.mxu0 0.0
  %108 = vmatpush1.msra.mxu0 0.0
  %109 = vmatprep.subr.mxu0 0.0
  %110 = vmatpush1.msra.mxu0 0.0
  %111 = vmatprep.subr.mxu0 0.0
  %112 = vmatpush1.msra.mxu0 0.0
  %113 = vmatprep.subr.mxu0 0.0
  %114 = vmatpush1.msra.mxu0 0.0
  %115 = vmatprep.subr.mxu0 0.0
  %116 = vmatpush1.msra.mxu0 0.0
  %117 = vmatprep.subr.mxu0 0.0
  %118 = vmatpush1.msra.mxu0 0.0
  %119 = vmatprep.subr.mxu0 0.0
  %120 = vmatpush1.msra.mxu0 0.0
  %121 = vmatprep.subr.mxu0 0.0
  %122 = vmatpush1.msra.mxu0 0.0
  %123 = vmatprep.subr.mxu0 0.0
  %124 = vmatpush1.msra.mxu0 0.0
  %125 = vmatprep.subr.mxu0 0.0
  %126 = vmatpush1.msra.mxu0 0.0
  %127 = vmatprep.subr.mxu0 0.0
  %128 = vmatpush1.msra.mxu0 0.0
  %129 = vmatprep.subr.mxu0 0.0
  %130 = vmatpush1.msra.mxu0 0.0
  %131 = vmatprep.subr.mxu0 0.0
  %132 = vmatpush1.msra.mxu0 0.0
  %133 = vmatprep.subr.mxu0 0.0
  %134 = vmatpush1.msra.mxu0 0.0
  %135 = vmatprep.subr.mxu0 0.0
  %136 = vmatpush1.msra.mxu0 0.0
  %137 = vmatprep.subr.mxu0 0.0
  %138 = vmatpush1.msra.mxu0 0.0
  %139 = vmatprep.subr.mxu0 0.0
  %140 = vmatpush1.msra.mxu0 0.0
  %141 = vmatprep.mubr.f32.mxu0 0.0
  %142 = vmatmul.mubr.f32.gmra.mrb[0].mxu0 %v65
  %v143 = vpop.f32.mrb[0].mxu0
  %v144 = vadd.f32 %v47, %v143
  %v145 = vpop.f32.mrb[0].mxu0
  %146 = vmatprep.mubr.f32.mxu0 0.0
  %147 = vmatmul.mubr.f32.gmra.mrb[0].mxu0 %v67
  %v148 = vpop.f32.mrb[0].mxu0
  %v149 = vadd.f32 %v52, %v148
  %v150 = vpop.f32.mrb[0].mxu0
  %151 = vmatprep.mubr.f32.mxu0 0.0
  %152 = vmatmul.mubr.f32.gmra.mrb[0].mxu0 %v69
  %v153 = vpop.f32.mrb[0].mxu0
  %v154 = vadd.f32 %v57, %v153
  %v155 = vpop.f32.mrb[0].mxu0
  %156 = vmatprep.mubr.f32.mxu0 0.0
  %157 = vmatmul.mubr.f32.gmra.mrb[0].mxu0 %v71
  %v158 = vpop.f32.mrb[0].mxu0
  %v159 = vadd.f32 %v62, %v158
  %v160 = vpop.f32.mrb[0].mxu0
  %161 = vdwg.mxu0
  %vm162 = vcmp.ge.f32.partialorder %v144, 0.0
  %vm163 = vcmp.ge.f32.partialorder %v149, 0.0
  %vm164 = vcmp.ge.f32.partialorder %v154, 0.0
  %vm165 = vcmp.ge.f32.partialorder %v159, 0.0
  %v166 = vmul.f32 %v144, 0.01
  %v167 = vmul.f32 %v149, 0.01
  %v168 = vmul.f32 %v154, 0.01
  %v169 = vmul.f32 %v159, 0.01
  %v170 = vsel %vm162, %v144, %v166
  %v171 = vsel %vm163, %v149, %v167
  %v172 = vsel %vm164, %v154, %v168
  %v173 = vsel %vm165, %v159, %v169
  %178 = vrot.lane.b32.xlu0 %v170, 127
  %v179 = vpop.permute.xlu0 %178
  %180 = vrot.lane.b32.xlu0 %v171, 127
  %v181 = vpop.permute.xlu0 %180
  %182 = vrot.lane.b32.xlu0 %v172, 127
  %v183 = vpop.permute.xlu0 %182
  %184 = vrot.lane.b32.xlu0 %v173, 127
  %v185 = vpop.permute.xlu0 %184
  %190 = vrot.lane.b32.xlu0 %v170, 126
  %v191 = vpop.permute.xlu0 %190
  %192 = vrot.lane.b32.xlu0 %v171, 126
  %v193 = vpop.permute.xlu0 %192
  %194 = vrot.lane.b32.xlu0 %v172, 126
  %v195 = vpop.permute.xlu0 %194
  %196 = vrot.lane.b32.xlu0 %v173, 126
  %v197 = vpop.permute.xlu0 %196
  %202 = vset.pattern.permute.xlu0 13
  %203 = vperm.xlu0 %202, %v11
  %v204 = vpop.permute.xlu0 %203
  %206 = vset.pattern.permute.xlu0 13
  %207 = vperm.xlu0 %206, %v12
  %v208 = vpop.permute.xlu0 %207
  %210 = vset.pattern.permute.xlu0 13
  %211 = vperm.xlu0 %210, %v13
  %v212 = vpop.permute.xlu0 %211
  %214 = vset.pattern.permute.xlu0 13
  %215 = vperm.xlu0 %214, %v14
  %v216 = vpop.permute.xlu0 %215
  %vm218 = vcmask 785408
  %v220 = vsel %vm218, %v15, 0
  %v223 = vsel %vm218, %v16, 0
  %v226 = vsel %vm218, %v17, 0
  %v229 = vsel %vm218, %v18, 0
  %231 = vmatprep.subr.mxu0 0.0
  %232 = vmatpush1.msra.mxu0 %v170
  %233 = vmatprep.subr.mxu0 0.0
  %234 = vmatpush1.msra.mxu0 %v171
  %235 = vmatprep.subr.mxu0 0.0
  %236 = vmatpush1.msra.mxu0 %v172
  %237 = vmatprep.subr.mxu0 0.0
  %238 = vmatpush1.msra.mxu0 %v173
  %239 = vmatprep.subr.mxu0 0.0
  %240 = vmatpush1.msra.mxu0 %v179
  %241 = vmatprep.subr.mxu0 0.0
  %242 = vmatpush1.msra.mxu0 %v181
  %243 = vmatprep.subr.mxu0 0.0
  %244 = vmatpush1.msra.mxu0 %v183
  %245 = vmatprep.subr.mxu0 0.0
  %246 = vmatpush1.msra.mxu0 %v185
  %247 = vmatprep.subr.mxu0 0.0
  %248 = vmatpush1.msra.mxu0 %v191
  %249 = vmatprep.subr.mxu0 0.0
  %250 = vmatpush1.msra.mxu0 %v193
  %251 = vmatprep.subr.mxu0 0.0
  %252 = vmatpush1.msra.mxu0 %v195
  %253 = vmatprep.subr.mxu0 0.0
  %254 = vmatpush1.msra.mxu0 %v197
  %255 = vmatprep.subr.mxu0 0.0
  %256 = vmatpush1.msra.mxu0 0.0
  %257 = vmatprep.subr.mxu0 0.0
  %258 = vmatpush1.msra.mxu0 0.0
  %259 = vmatprep.subr.mxu0 0.0
  %260 = vmatpush1.msra.mxu0 0.0
  %261 = vmatprep.subr.mxu0 0.0
  %262 = vmatpush1.msra.mxu0 0.0
  %263 = vmatprep.subr.mxu0 0.0
  %264 = vmatpush1.msra.mxu0 0.0
  %265 = vmatprep.subr.mxu0 0.0
  %266 = vmatpush1.msra.mxu0 0.0
  %267 = vmatprep.subr.mxu0 0.0
  %268 = vmatpush1.msra.mxu0 0.0
  %269 = vmatprep.subr.mxu0 0.0
  %270 = vmatpush1.msra.mxu0 0.0
  %271 = vmatprep.subr.mxu0 0.0
  %272 = vmatpush1.msra.mxu0 0.0
  %273 = vmatprep.subr.mxu0 0.0
  %274 = vmatpush1.msra.mxu0 0.0
  %275 = vmatprep.subr.mxu0 0.0
  %276 = vmatpush1.msra.mxu0 0.0
  %277 = vmatprep.subr.mxu0 0.0
  %278 = vmatpush1.msra.mxu0 0.0
  %279 = vmatprep.subr.mxu0 0.0
  %280 = vmatpush1.msra.mxu0 0.0
  %281 = vmatprep.subr.mxu0 0.0
  %282 = vmatpush1.msra.mxu0 0.0
  %283 = vmatprep.subr.mxu0 0.0
  %284 = vmatpush1.msra.mxu0 0.0
  %285 = vmatprep.subr.mxu0 0.0
  %286 = vmatpush1.msra.mxu0 0.0
  %287 = vmatprep.subr.mxu0 0.0
  %288 = vmatpush1.msra.mxu0 0.0
  %289 = vmatprep.subr.mxu0 0.0
  %290 = vmatpush1.msra.mxu0 0.0
  %291 = vmatprep.subr.mxu0 0.0
  %292 = vmatpush1.msra.mxu0 0.0
  %293 = vmatprep.subr.mxu0 0.0
  %294 = vmatpush1.msra.mxu0 0.0
  %295 = vmatprep.mubr.f32.mxu0 0.0
  %296 = vmatmul.mubr.f32.gmra.mrb[0].mxu0 %v220
  %v297 = vpop.f32.mrb[0].mxu0
  %v298 = vadd.f32 %v204, %v297
  %v299 = vpop.f32.mrb[0].mxu0
  %300 = vmatprep.mubr.f32.mxu0 0.0
  %301 = vmatmul.mubr.f32.gmra.mrb[0].mxu0 %v223
  %v302 = vpop.f32.mrb[0].mxu0
  %v303 = vadd.f32 %v208, %v302
  %v304 = vpop.f32.mrb[0].mxu0
  %305 = vmatprep.mubr.f32.mxu0 0.0
  %306 = vmatmul.mubr.f32.gmra.mrb[0].mxu0 %v226
  %v307 = vpop.f32.mrb[0].mxu0
  %v308 = vadd.f32 %v212, %v307
  %v309 = vpop.f32.mrb[0].mxu0
  %310 = vmatprep.mubr.f32.mxu0 0.0
  %311 = vmatmul.mubr.f32.gmra.mrb[0].mxu0 %v229
  %v312 = vpop.f32.mrb[0].mxu0
  %v313 = vadd.f32 %v216, %v312
  %v314 = vpop.f32.mrb[0].mxu0
  %315 = vdwg.mxu0
  %vm316 = vcmp.ge.f32.partialorder %v298, 0.0
  %vm317 = vcmp.ge.f32.partialorder %v303, 0.0
  %vm318 = vcmp.ge.f32.partialorder %v308, 0.0
  %vm319 = vcmp.ge.f32.partialorder %v313, 0.0
  %v320 = vmul.f32 %v298, 0.01
  %v321 = vmul.f32 %v303, 0.01
  %v322 = vmul.f32 %v308, 0.01
  %v323 = vmul.f32 %v313, 0.01
  %v324 = vsel %vm316, %v298, %v320
  %v325 = vsel %vm317, %v303, %v321
  %v326 = vsel %vm318, %v308, %v322
  %v327 = vsel %vm319, %v313, %v323
  %332 = vrot.lane.b32.xlu0 %v324, 127
  %v333 = vpop.permute.xlu0 %332
  %334 = vrot.lane.b32.xlu0 %v325, 127
  %v335 = vpop.permute.xlu0 %334
  %336 = vrot.lane.b32.xlu0 %v326, 127
  %v337 = vpop.permute.xlu0 %336
  %338 = vrot.lane.b32.xlu0 %v327, 127
  %v339 = vpop.permute.xlu0 %338
  %v344 = vmax.f32 %v324, %v333
  %v345 = vmax.f32 %v325, %v335
  %v346 = vmax.f32 %v326, %v337
  %v347 = vmax.f32 %v327, %v339
  %v348 = vmul.f32 %v344, %v19
  %v349 = vmul.f32 %v345, %v20
  %v350 = vmul.f32 %v346, %v21
  %v351 = vmul.f32 %v347, %v22
  %vm352 = vcmask 1006592
  %v354 = vsel %vm352, %v348, 0
  %v357 = vsel %vm352, %v349, 0
  %v360 = vsel %vm352, %v350, 0
  %v363 = vsel %vm352, %v351, 0
  %vm365 = vcmask 1042432
  %v367 = vsel %vm365, %v38, 0
  %369 = vmatprep.subr.mxu0 0.0
  %370 = vmatpush1.msra.mxu0 %v23
  %371 = vmatprep.subr.mxu0 0.0
  %372 = vmatpush1.msra.mxu0 %v24
  %373 = vmatprep.subr.mxu0 0.0
  %374 = vmatpush1.msra.mxu0 %v25
  %375 = vmatprep.subr.mxu0 0.0
  %376 = vmatpush1.msra.mxu0 %v26
  %377 = vmatprep.subr.mxu0 0.0
  %378 = vmatpush1.msra.mxu0 %v27
  %379 = vmatprep.subr.mxu0 0.0
  %380 = vmatpush1.msra.mxu0 %v28
  %381 = vmatprep.subr.mxu0 0.0
  %382 = vmatpush1.msra.mxu0 %v29
  %383 = vmatprep.subr.mxu0 0.0
  %384 = vmatpush1.msra.mxu0 %v30
  %385 = vmatprep.subr.mxu0 0.0
  %386 = vmatpush1.msra.mxu0 %v31
  %387 = vmatprep.subr.mxu0 0.0
  %388 = vmatpush1.msra.mxu0 %v32
  %389 = vmatprep.subr.mxu0 0.0
  %390 = vmatpush1.msra.mxu0 %v33
  %391 = vmatprep.subr.mxu0 0.0
  %392 = vmatpush1.msra.mxu0 %v34
  %393 = vmatprep.subr.mxu0 0.0
  %394 = vmatpush1.msra.mxu0 %v35
  %395 = vmatprep.subr.mxu0 0.0
  %396 = vmatpush1.msra.mxu0 %v36
  %397 = vmatprep.subr.mxu0 0.0
  %398 = vmatpush1.msra.mxu0 %v37
  %399 = vmatprep.subr.mxu0 0.0
  %400 = vmatpush1.msra.mxu0 %v367
  %401 = vmatprep.subr.mxu0 0.0
  %402 = vmatpush1.msra.mxu0 0.0
  %403 = vmatprep.subr.mxu0 0.0
  %404 = vmatpush1.msra.mxu0 0.0
  %405 = vmatprep.subr.mxu0 0.0
  %406 = vmatpush1.msra.mxu0 0.0
  %407 = vmatprep.subr.mxu0 0.0
  %408 = vmatpush1.msra.mxu0 0.0
  %409 = vmatprep.subr.mxu0 0.0
  %410 = vmatpush1.msra.mxu0 0.0
  %411 = vmatprep.subr.mxu0 0.0
  %412 = vmatpush1.msra.mxu0 0.0
  %413 = vmatprep.subr.mxu0 0.0
  %414 = vmatpush1.msra.mxu0 0.0
  %415 = vmatprep.subr.mxu0 0.0
  %416 = vmatpush1.msra.mxu0 0.0
  %417 = vmatprep.subr.mxu0 0.0
  %418 = vmatpush1.msra.mxu0 0.0
  %419 = vmatprep.subr.mxu0 0.0
  %420 = vmatpush1.msra.mxu0 0.0
  %421 = vmatprep.subr.mxu0 0.0
  %422 = vmatpush1.msra.mxu0 0.0
  %423 = vmatprep.subr.mxu0 0.0
  %424 = vmatpush1.msra.mxu0 0.0
  %425 = vmatprep.subr.mxu0 0.0
  %426 = vmatpush1.msra.mxu0 0.0
  %427 = vmatprep.subr.mxu0 0.0
  %428 = vmatpush1.msra.mxu0 0.0
  %429 = vmatprep.subr.mxu0 0.0
  %430 = vmatpush1.msra.mxu0 0.0
  %431 = vmatprep.subr.mxu0 0.0
  %432 = vmatpush1.msra.mxu0 0.0
  %433 = vmatprep.mubr.f32.mxu0 0.0
  %434 = vmatmul.mubr.f32.gmra.mrb[0].mxu0 %v354
  %v435 = vpop.f32.mrb[0].mxu0
  %v436 = vadd.f32 0.0, %v435
  %v437 = vpop.f32.mrb[0].mxu0
  %438 = vmatprep.mubr.f32.mxu0 0.0
  %439 = vmatmul.mubr.f32.gmra.mrb[0].mxu0 %v357
  %v440 = vpop.f32.mrb[0].mxu0
  %v441 = vadd.f32 0.0, %v440
  %v442 = vpop.f32.mrb[0].mxu0
  %443 = vmatprep.mubr.f32.mxu0 0.0
  %444 = vmatmul.mubr.f32.gmra.mrb[0].mxu0 %v360
  %v445 = vpop.f32.mrb[0].mxu0
  %v446 = vadd.f32 0.0, %v445
  %v447 = vpop.f32.mrb[0].mxu0
  %448 = vmatprep.mubr.f32.mxu0 0.0
  %449 = vmatmul.mubr.f32.gmra.mrb[0].mxu0 %v363
  %v450 = vpop.f32.mrb[0].mxu0
  %v451 = vadd.f32 0.0, %v450
  %v452 = vpop.f32.mrb[0].mxu0
  %453 = vdwg.mxu0
  %v454 = vadd.f32 %v436, %v441
  %v455 = vadd.f32 %v454, %v446
  %v456 = vadd.f32 %v455, %v451
  %v457 = vrot.slane %v456, 4
  %v458 = vadd.f32 %v456, %v457
  %v459 = vrot.slane %v458, 2
  %v460 = vadd.f32 %v458, %v459
  %v461 = vrot.slane %v460, 1
  %v462 = vadd.f32 %v460, %v461
  %v463 = vmul.f32 %v43, %v39
  %v464 = vadd.f32 %v462, %v463
  %v465 = vadd.f32 %v464, %v40
  %v466 = vtanh.pop %v465
  %v467 = vlaneseq
  %v468 = vshrl.u32 %v467, 7
  %v469 = vsub.s32 0, %v468
  %v470 = vrot.slane %v466, %v469
  %471 = vst [vmem:[%s2] sm:$0xff] %v470
  // Predicated region
  $region10: #{policy_network_cnn.1} parent=0 // pred_check
    _
  $region11: #{policy_network_cnn.1} parent=0 // pred_check_branch
    %473 = sbr.rel (0) target = $region13
  $region12: #{policy_network_cnn.1} parent=0 // pred_region
    _
  $region13: #{policy_network_cnn.1} parent=0 // pred_fallthru
    _
  // Predicated region
  $region14: #{policy_network_cnn.1} parent=0 // pred_check
    _
  $region15: #{policy_network_cnn.1} parent=0 // pred_check_branch
    %475 = sbr.rel (0) target = $region17
  $region16: #{policy_network_cnn.1} parent=0 // pred_region
    _
  $region17: #{policy_network_cnn.1} parent=0 // pred_fallthru
    _

</llo_original>
